<compile_context>
chip_gen: v7x
topology: tpu7x:2x2x1
jax: 0.10.0
libtpu: 0.0.40
codegen_flags: <defaults>
</compile_context>

<pallas_src>
import functools

import jax
import jax.numpy as jnp
import numpy as np
from jax.experimental import pallas as pl
from jax.experimental.pallas import tpu as pltpu


def _round_up(x, m):
    return (x + m - 1) // m * m


def _vq_kernel(x_ref, emb_ref, emb_sq_ref, quant_ref, idx_ref, sse_ref,
               cnt_ref, *, total_rows: int, use_bf16_dots: bool):
    """One TM-row tile of the VQ forward.

    x_ref      : (TM, D) f32   flattened NHWC rows (zero-padded past total_rows)
    emb_ref    : (K,  D) f32   codebook (full block, revisited each tile)
    emb_sq_ref : (1,  K) f32   precomputed ||e_k||^2 (hoisted out of kernel)
    quant_ref  : (TM, D) f32   nearest codebook row per input row
    idx_ref    : (TM, 1) i32   argmin index per row
    sse_ref    : (1,1,1) f32   per-tile sum((q - x)^2) over valid rows
    cnt_ref    : (1,1,K) f32   per-tile codeword histogram over valid rows
    """
    x = x_ref[...]                                   # (TM, D)
    e = emb_ref[...]                                 # (K,  D)
    e2 = emb_sq_ref[...]                             # (1,  K)

    tm, _ = x.shape
    k = e.shape[0]

    # argmin_k ||x - e_k||^2 == argmin_k (||e_k||^2 - 2 x.e_k): the per-row
    # ||x||^2 term is constant under the argmin, so it is never computed.
    if use_bf16_dots:
        xd = x.astype(jnp.bfloat16)
        ed = e.astype(jnp.bfloat16)
    else:
        xd, ed = x, e
    dots = jax.lax.dot_general(xd, ed, (((1,), (1,)), ((), ())),
                               preferred_element_type=jnp.float32)  # (TM, K)
    dist = e2 - 2.0 * dots                                          # (TM, K)

    # first-min tie-break, matching torch.argmin
    iota_k = jax.lax.broadcasted_iota(jnp.int32, dist.shape, 1)
    dmin = jnp.min(dist, axis=1, keepdims=True)                     # (TM, 1)
    idx = jnp.min(jnp.where(dist == dmin, iota_k, k), axis=1,
                  keepdims=True).astype(jnp.int32)                  # (TM, 1)
    idx_ref[...] = idx

    # one-hot gather of codebook rows on the MXU, kept in f32 so quantized
    # rows are exact codebook entries even when the distance matmul is bf16.
    # Built from idx (not from dist == dmin) so ties pick exactly one row.
    onehot = (iota_k == idx).astype(jnp.float32)                    # (TM, K)
    q = jnp.dot(onehot, e, preferred_element_type=jnp.float32)      # (TM, D)
    quant_ref[...] = q

    # mask out the zero-padded tail rows of the last tile
    row0 = pl.program_id(0) * tm
    rows = row0 + jax.lax.broadcasted_iota(jnp.int32, (tm, 1), 0)
    valid = (rows < total_rows).astype(jnp.float32)                 # (TM, 1)

    diff = q - x
    sse = jnp.sum(diff * diff * valid)
    sse_ref[...] = sse[None, None, None]
    counts = jnp.sum(onehot * valid, axis=0, keepdims=True)         # (1, K)
    cnt_ref[...] = counts[None]


def vector_quantize(inputs_nchw, embedding, commitment_cost, *,
                    use_bf16_dots=False, tile_rows=1024):
    """inputs_nchw: (N, C, H, W) f32 with C == embedding_dim.
    embedding:   (num_embeddings, embedding_dim) f32.
    Returns (loss, quantized_nchw, perplexity, encoding_indices)."""
    n, c, h, w = inputs_nchw.shape
    k, d = embedding.shape
    assert c == d
    m = n * h * w

    # glue: NCHW -> NHWC -> (M, D)
    inputs_nhwc = jnp.transpose(inputs_nchw, (0, 2, 3, 1))
    flat = inputs_nhwc.reshape(m, d).astype(jnp.float32)

    emb = embedding.astype(jnp.float32)
    emb_sq = jnp.sum(emb * emb, axis=1)[None, :]        # (1, K), hoisted

    # Row tiling: single full block if it is small, else TM-row tiles
    # (multiple of 128) with a zero-padded tail tile.
    if m <= tile_rows:
        tm = _round_up(m, 128)
    else:
        tm = tile_rows
    m_pad = _round_up(m, tm)
    num_tiles = m_pad // tm
    if m_pad != m:
        flat = jnp.pad(flat, ((0, m_pad - m), (0, 0)))

    kernel = functools.partial(_vq_kernel, total_rows=m,
                               use_bf16_dots=bool(use_bf16_dots))

    quant_flat, idx_pad, sse_parts, cnt_parts = pl.pallas_call(
        kernel,
        out_shape=(
            jax.ShapeDtypeStruct((m_pad, d), jnp.float32),
            jax.ShapeDtypeStruct((m_pad, 1), jnp.int32),
            jax.ShapeDtypeStruct((num_tiles, 1, 1), jnp.float32),
            jax.ShapeDtypeStruct((num_tiles, 1, k), jnp.float32),
        ),
        grid=(num_tiles,),
        in_specs=[
            pl.BlockSpec((tm, d), lambda i: (i, 0)),
            pl.BlockSpec((k, d), lambda i: (0, 0)),
            pl.BlockSpec((1, k), lambda i: (0, 0)),
        ],
        out_specs=(
            pl.BlockSpec((tm, d), lambda i: (i, 0)),
            pl.BlockSpec((tm, 1), lambda i: (i, 0)),
            pl.BlockSpec((1, 1, 1), lambda i: (i, 0, 0)),
            pl.BlockSpec((1, 1, k), lambda i: (i, 0, 0)),
        ),
        compiler_params=pltpu.CompilerParams(
            dimension_semantics=("parallel",),
            vmem_limit_bytes=48 * 1024 * 1024),
    )(flat, emb, emb_sq)

    # tiny epilogue: combine per-tile partials
    mse = jnp.sum(sse_parts) / jnp.float32(m * d)
    # forward value of q_latent_loss + commitment_cost * e_latent_loss
    loss = (1.0 + commitment_cost) * mse
    avg_probs = jnp.sum(cnt_parts, axis=0).reshape(k) / jnp.float32(m)
    perplexity = jnp.exp(-jnp.sum(avg_probs * jnp.log(avg_probs + 1e-10)))

    # straight-through estimator: forward value of quantized is unchanged
    quantized_nhwc = quant_flat[:m].reshape(n, h, w, d)
    quantized_nchw = jnp.transpose(quantized_nhwc, (0, 3, 1, 2))
    indices = idx_pad[:m]
    return loss, quantized_nchw, perplexity, indices


def _reference(inputs_nchw, embedding, commitment_cost):
    """Pure-JAX reference mirroring the PyTorch forward."""
    n, c, h, w = inputs_nchw.shape
    k, d = embedding.shape
    x = jnp.transpose(inputs_nchw, (0, 2, 3, 1)).reshape(-1, d)
    dist = (jnp.sum(x ** 2, axis=1, keepdims=True)
            + jnp.sum(embedding ** 2, axis=1)
            - 2.0 * jnp.matmul(x, embedding.T,
                               precision=jax.lax.Precision.HIGHEST))
    idx = jnp.argmin(dist, axis=1)
    onehot = jax.nn.one_hot(idx, k, dtype=jnp.float32)
    q = onehot @ embedding
    mse = jnp.mean((q - x) ** 2)
    loss = (1.0 + commitment_cost) * mse
    avg_probs = jnp.mean(onehot, axis=0)
    perp = jnp.exp(-jnp.sum(avg_probs * jnp.log(avg_probs + 1e-10)))
    q_nchw = jnp.transpose(q.reshape(n, h, w, d), (0, 3, 1, 2))
    return loss, q_nchw, perp, idx[:, None].astype(jnp.int32)


def _check(got, ref, name):
    """Tolerance checks robust to benign near-tie argmin flips from
    matmul rounding-order differences between the kernel and the reference."""
    loss_g, q_g, perp_g, idx_g = [np.asarray(a) for a in got]
    loss_r, q_r, perp_r, idx_r = [np.asarray(a) for a in ref]
    np.testing.assert_allclose(loss_g, loss_r, rtol=1e-4, atol=1e-6,
                               err_msg=f"{name}: loss mismatch")
    np.testing.assert_allclose(perp_g, perp_r, rtol=5e-2, atol=1e-2,
                               err_msg=f"{name}: perplexity mismatch")
    idx_agree = float(np.mean(idx_g == idx_r))
    assert idx_agree >= 0.99, f"{name}: index agreement too low ({idx_agree})"
    q_close = float(np.mean(np.isclose(q_g, q_r, rtol=1e-5, atol=1e-6)))
    assert q_close >= 0.98, f"{name}: quantized agreement too low ({q_close})"


if __name__ == "__main__":
    num_embeddings = 128
    embedding_dim = 64
    commitment_cost = 0.25

    key = jax.random.PRNGKey(0)
    k_e, k_x1, k_x2 = jax.random.split(key, 3)

    # nn.Embedding weight init: uniform(-1/K, 1/K), deterministic here.
    embedding = jax.random.uniform(
        k_e, (num_embeddings, embedding_dim), dtype=jnp.float32,
        minval=-1.0 / num_embeddings, maxval=1.0 / num_embeddings)

    # Case 1: small single-tile shape (N=2, C=64, H=W=8 -> M=128 rows).
    x_small = jax.random.normal(
        k_x1, (2, embedding_dim, 8, 8), dtype=jnp.float32)
    out_small = vector_quantize(x_small, embedding, commitment_cost)
    jax.block_until_ready(out_small)
    _check(out_small, _reference(x_small, embedding, commitment_cost), "small")

    # Case 2: multi-tile shape exercising row tiling + tail masking
    # (N=2, C=64, H=W=24 -> M=1152 rows -> two 1024-row tiles, 896 padded).
    x_big = jax.random.normal(
        k_x2, (2, embedding_dim, 24, 24), dtype=jnp.float32)
    out_big = vector_quantize(x_big, embedding, commitment_cost)
    jax.block_until_ready(out_big)
    ref_big = _reference(x_big, embedding, commitment_cost)
    _check(out_big, ref_big, "big")

    # Case 3: bf16 distance matmul (recommended on v6e/v7x). Near-tie argmins
    # may flip, so only loose checks here.
    out_bf16 = vector_quantize(x_big, embedding, commitment_cost,
                               use_bf16_dots=True)
    jax.block_until_ready(out_bf16)
    np.testing.assert_allclose(np.asarray(out_bf16[0]), np.asarray(ref_big[0]),
                               rtol=1e-2, atol=1e-3)
    bf16_idx_agree = float(np.mean(np.asarray(out_bf16[3])
                                   == np.asarray(ref_big[3])))
    assert bf16_idx_agree >= 0.95, f"bf16 index agreement {bf16_idx_agree}"

    print("KERNEL_OK")
</pallas_src>

<mosaic_0001>
module attributes {stable_mosaic.version = 11 : i64} {
  func.func @_vq_kernel(%arg0: i32, %arg1: memref<128x64xf32, #tpu.memory_space<vmem>>, %arg2: memref<128x64xf32, #tpu.memory_space<vmem>>, %arg3: memref<1x128xf32, #tpu.memory_space<vmem>>, %arg4: memref<128x64xf32, #tpu.memory_space<vmem>>, %arg5: memref<128x1xi32, #tpu.memory_space<vmem>>, %arg6: memref<1x1x1xf32, #tpu.memory_space<vmem>>, %arg7: memref<1x1x128xf32, #tpu.memory_space<vmem>>) attributes {dimension_semantics = [#tpu.dimension_semantics<parallel>], iteration_bounds = array<i64: 1>, scalar_prefetch = 0 : i64, scratch_operands = 0 : i64, tpu.core_type = #tpu.core_type<tc>, window_params = [{transform_indices = @transform_0, window_bounds = array<i64: 128, 64>}, {pipeline_mode = #tpu.pipeline_mode<synchronous>, transform_indices = @transform_1, window_bounds = array<i64: 128, 64>}, {pipeline_mode = #tpu.pipeline_mode<synchronous>, transform_indices = @transform_2, window_bounds = array<i64: 1, 128>}, {transform_indices = @transform_3, window_bounds = array<i64: 128, 64>}, {transform_indices = @transform_4, window_bounds = array<i64: 128, 1>}, {transform_indices = @transform_5, window_bounds = array<i64: 1, 1, 1>}, {transform_indices = @transform_6, window_bounds = array<i64: 1, 1, 128>}]} {
    %c0 = arith.constant 0 : index
    %c0_0 = arith.constant 0 : index
    %0 = vector.load %arg1[%c0, %c0_0] : memref<128x64xf32, #tpu.memory_space<vmem>>, vector<128x64xf32>
    %c0_1 = arith.constant 0 : index
    %c0_2 = arith.constant 0 : index
    %1 = vector.load %arg2[%c0_1, %c0_2] : memref<128x64xf32, #tpu.memory_space<vmem>>, vector<128x64xf32>
    %c0_3 = arith.constant 0 : index
    %c0_4 = arith.constant 0 : index
    %2 = vector.load %arg3[%c0_3, %c0_4] : memref<1x128xf32, #tpu.memory_space<vmem>>, vector<1x128xf32>
    %cst = arith.constant dense<0.000000e+00> : vector<128x128xf32>
    %3 = tpu.matmul %0, %1, %cst {dimension_numbers = #tpu.dot_dimension_numbers<[1], [1], [0], [0], [0, 0, 1, 0], [], []>} : vector<128x64xf32>, vector<128x64xf32>, vector<128x128xf32> -> vector<128x128xf32>
    %cst_5 = arith.constant 2.000000e+00 : f32
    %4 = vector.broadcast %cst_5 : f32 to vector<128x128xf32>
    %5 = arith.mulf %4, %3 : vector<128x128xf32>
    %6 = vector.broadcast %2 : vector<1x128xf32> to vector<128x128xf32>
    %7 = arith.subf %6, %5 : vector<128x128xf32>
    %8 = tpu.iota {dimensions = array<i32: 1>} : vector<128x128xi32>
    %cst_6 = arith.constant dense<0x7F800000> : vector<128xf32>
    %9 = vector.multi_reduction <minimumf>, %7, %cst_6 [1] : vector<128x128xf32> to vector<128xf32>
    %10 = vector.shape_cast %9 : vector<128xf32> to vector<128x1xf32>
    %11 = vector.broadcast %10 : vector<128x1xf32> to vector<128x128xf32>
    %12 = arith.cmpf oeq, %7, %11 : vector<128x128xf32>
    %c128_i32 = arith.constant 128 : i32
    %13 = vector.broadcast %c128_i32 : i32 to vector<128x128xi32>
    %14 = arith.select %12, %8, %13 : vector<128x128xi1>, vector<128x128xi32>
    %cst_7 = arith.constant dense<2147483647> : vector<128xi32>
    %15 = vector.multi_reduction <minsi>, %14, %cst_7 [1] : vector<128x128xi32> to vector<128xi32>
    %16 = vector.shape_cast %15 : vector<128xi32> to vector<128x1xi32>
    %c0_8 = arith.constant 0 : index
    %c0_9 = arith.constant 0 : index
    %17 = vector.load %arg5[%c0_8, %c0_9] : memref<128x1xi32, #tpu.memory_space<vmem>>, vector<128x1xi32>
    tpu.vector_store %arg5[%c0_8, %c0_9], %16 {strides = array<i32>} : memref<128x1xi32, #tpu.memory_space<vmem>>, vector<128x1xi32>,
    %18 = vector.broadcast %16 : vector<128x1xi32> to vector<128x128xi32>
    %19 = arith.cmpi eq, %8, %18 : vector<128x128xi32>
    %20 = arith.extui %19 : vector<128x128xi1> to vector<128x128xi32>
    %21 = arith.sitofp %20 : vector<128x128xi32> to vector<128x128xf32>
    %cst_10 = arith.constant dense<0.000000e+00> : vector<128x64xf32>
    %22 = tpu.matmul %21, %1, %cst_10 {dimension_numbers = #tpu.dot_dimension_numbers<[1], [0], [0], [1], [0, 0, 1, 1], [], []>} : vector<128x128xf32>, vector<128x64xf32>, vector<128x64xf32> -> vector<128x64xf32>
    %c0_11 = arith.constant 0 : index
    %c0_12 = arith.constant 0 : index
    %23 = vector.load %arg4[%c0_11, %c0_12] : memref<128x64xf32, #tpu.memory_space<vmem>>, vector<128x64xf32>
    tpu.vector_store %arg4[%c0_11, %c0_12], %22 {strides = array<i32>} : memref<128x64xf32, #tpu.memory_space<vmem>>, vector<128x64xf32>,
    %c128_i32_13 = arith.constant 128 : i32
    %24 = arith.muli %arg0, %c128_i32_13 : i32
    %25 = tpu.iota {dimensions = array<i32: 0>} : vector<128x1xi32>
    %26 = vector.broadcast %24 : i32 to vector<128x1xi32>
    %27 = arith.addi %26, %25 : vector<128x1xi32>
    %c128_i32_14 = arith.constant 128 : i32
    %28 = vector.broadcast %c128_i32_14 : i32 to vector<128x1xi32>
    %29 = arith.cmpi slt, %27, %28 : vector<128x1xi32>
    %30 = arith.extui %29 : vector<128x1xi1> to vector<128x1xi32>
    %31 = arith.sitofp %30 : vector<128x1xi32> to vector<128x1xf32>
    %32 = arith.subf %22, %0 : vector<128x64xf32>
    %33 = arith.mulf %32, %32 : vector<128x64xf32>
    %34 = vector.broadcast %31 : vector<128x1xf32> to vector<128x64xf32>
    %35 = arith.mulf %33, %34 : vector<128x64xf32>
    %36 = vector.shape_cast %35 : vector<128x64xf32> to vector<1x128x64xf32>
    %cst_15 = arith.constant dense<0.000000e+00> : vector<1xf32>
    %37 = vector.multi_reduction <add>, %36, %cst_15 [1, 2] : vector<1x128x64xf32> to vector<1xf32>
    %38 = vector.shape_cast %37 : vector<1xf32> to vector<1x1x1xf32>
    %39 = vector.extract %38[0, 0, 0] : f32 from vector<1x1x1xf32>
    %40 = vector.broadcast %39 : f32 to vector<1x1x1xf32>
    %c0_16 = arith.constant 0 : index
    %c0_17 = arith.constant 0 : index
    %c0_18 = arith.constant 0 : index
    %41 = vector.load %arg6[%c0_16, %c0_17, %c0_18] : memref<1x1x1xf32, #tpu.memory_space<vmem>>, vector<1x1x1xf32>
    tpu.vector_store %arg6[%c0_16, %c0_17, %c0_18], %40 {strides = array<i32>} : memref<1x1x1xf32, #tpu.memory_space<vmem>>, vector<1x1x1xf32>,
    %42 = vector.broadcast %31 : vector<128x1xf32> to vector<128x128xf32>
    %43 = arith.mulf %21, %42 : vector<128x128xf32>
    %cst_19 = arith.constant dense<0.000000e+00> : vector<128xf32>
    %44 = vector.multi_reduction <add>, %43, %cst_19 [0] : vector<128x128xf32> to vector<128xf32>
    %45 = vector.shape_cast %44 : vector<128xf32> to vector<1x128xf32>
    %46 = vector.shape_cast %45 : vector<1x128xf32> to vector<1x1x128xf32>
    %c0_20 = arith.constant 0 : index
    %c0_21 = arith.constant 0 : index
    %c0_22 = arith.constant 0 : index
    %47 = vector.load %arg7[%c0_20, %c0_21, %c0_22] : memref<1x1x128xf32, #tpu.memory_space<vmem>>, vector<1x1x128xf32>
    tpu.vector_store %arg7[%c0_20, %c0_21, %c0_22], %46 {strides = array<i32>} : memref<1x1x128xf32, #tpu.memory_space<vmem>>, vector<1x1x128xf32>,
    return
  }
  func.func @transform_0(%arg0: i32) -> (i32, i32) {
    %c0_i32 = arith.constant 0 : i32
    %c0_i32_0 = arith.constant 0 : i32
    return %arg0, %c0_i32 : i32, i32
  }
  func.func @transform_1(%arg0: i32) -> (i32, i32) {
    %c0_i32 = arith.constant 0 : i32
    %c0_i32_0 = arith.constant 0 : i32
    %c0_i32_1 = arith.constant 0 : i32
    return %c0_i32, %c0_i32_0 : i32, i32
  }
  func.func @transform_2(%arg0: i32) -> (i32, i32) {
    %c0_i32 = arith.constant 0 : i32
    %c0_i32_0 = arith.constant 0 : i32
    %c0_i32_1 = arith.constant 0 : i32
    return %c0_i32, %c0_i32_0 : i32, i32
  }
  func.func @transform_3(%arg0: i32) -> (i32, i32) {
    %c0_i32 = arith.constant 0 : i32
    %c0_i32_0 = arith.constant 0 : i32
    return %arg0, %c0_i32 : i32, i32
  }
  func.func @transform_4(%arg0: i32) -> (i32, i32) {
    %c0_i32 = arith.constant 0 : i32
    %c0_i32_0 = arith.constant 0 : i32
    return %arg0, %c0_i32 : i32, i32
  }
  func.func @transform_5(%arg0: i32) -> (i32, i32, i32) {
    %c0_i32 = arith.constant 0 : i32
    %c0_i32_0 = arith.constant 0 : i32
    %c0_i32_1 = arith.constant 0 : i32
    return %arg0, %c0_i32, %c0_i32_0 : i32, i32, i32
  }
  func.func @transform_6(%arg0: i32) -> (i32, i32, i32) {
    %c0_i32 = arith.constant 0 : i32
    %c0_i32_0 = arith.constant 0 : i32
    %c0_i32_1 = arith.constant 0 : i32
    return %arg0, %c0_i32, %c0_i32_0 : i32, i32, i32
  }
}

</mosaic_0001>

<llo_original>
// kernel: tpu_custom_call.1
$region0: #{tpu_custom_call.1}
  #allocation0 [shape = 'u32[]', space=smem, size = 0x4, offset = 0x4, fixed_abs, tag = 'smem constant byte address 0x4 - core index']
  #allocation1 [shape = 'u32[144,128]{1,0:T(1,128)}', space=vmem, size = 0x12000, scoped, tag = 'internal scratch']
  %s0 = inlined_call_operand.vmem [shape: f32[128,64], index: 0, kind: input, shape index: {}]
  %s1 = inlined_call_operand.vmem [shape: f32[128,64], index: 1, kind: input, shape index: {}]
  %s2 = inlined_call_operand.vmem [shape: f32[1,128], index: 2, kind: input, shape index: {}]
  %s3 = inlined_call_operand.vmem [shape: f32[128,64], index: 3, kind: output, shape index: {0}]
  %s4 = inlined_call_operand.vmem [shape: s32[128,1], index: 4, kind: output, shape index: {1}]
  %s5 = inlined_call_operand.hbm [shape: f32[1,1,1], index: 5, kind: output, shape index: {2}]
  %s6 = inlined_call_operand.hbm [shape: f32[1,1,128], index: 6, kind: output, shape index: {3}]
  %7 = xla_tuple %s3, %s4, %s5, %s6
  %s8 = sld [smem:[#allocation0]]
  $region46: #{tpu_custom_call.1} parent=0
    _
  %s10 = ssub.s32 1, %s8
  %s11 = scalar_select 0, %s10, %s8
  $region1: #{tpu_custom_call.1} parent=0
    #allocation2 [shape = 'u8[512]{0}', space=vmem, size = 0x400, scoped, tag = 'output window, operand 2, single buffered']
    #allocation3 [shape = 's32[1]{0}', space=sflag, size = 0x4, scoped, tag = 'scoped memory for tpu_custom_call.1']
    #allocation4 [shape = 'u8[512]{0}', space=vmem, size = 0x400, scoped, tag = 'output window, operand 3, single buffered']
    #allocation5 [shape = 's32[1]{0}', space=sflag, size = 0x4, scoped, tag = 'scoped memory for tpu_custom_call.1']
    %12 = vsyncpa [#allocation3], 0
    %13 = vsyncpa [#allocation5], 0
    // Predicated region
    $region2: #{tpu_custom_call.1} parent=1 // pred_check
      _
    $region3: #{tpu_custom_call.1} parent=1 // pred_check_branch
      %15 = sbr.rel (0) target = $region5
    $region4: #{tpu_custom_call.1} parent=1 // pred_region
      _
    $region5: #{tpu_custom_call.1} parent=1 // pred_fallthru
      _
    // Predicated region
    $region6: #{tpu_custom_call.1} parent=1 // pred_check
      _
    $region7: #{tpu_custom_call.1} parent=1 // pred_check_branch
      %17 = sbr.rel (0) target = $region9
    $region8: #{tpu_custom_call.1} parent=1 // pred_region
      _
    $region9: #{tpu_custom_call.1} parent=1 // pred_fallthru
      _
    // Predicated region
    $region10: #{tpu_custom_call.1} parent=1 // pred_check
      _
    $region11: #{tpu_custom_call.1} parent=1 // pred_check_branch
      %19 = sbr.rel (0) target = $region13
    $region12: #{tpu_custom_call.1} parent=1 // pred_region
      _
    $region13: #{tpu_custom_call.1} parent=1 // pred_fallthru
      _
    %v20 = vld [vmem:[%s0] sm:$0xff]
    %v21 = vld [vmem:[%s0 + $0x8] sm:$0xff]
    %v22 = vld [vmem:[%s0 + $0x10] sm:$0xff]
    %v23 = vld [vmem:[%s0 + $0x18] sm:$0xff]
    %v24 = vld [vmem:[%s0 + $0x20] sm:$0xff]
    %v25 = vld [vmem:[%s0 + $0x28] sm:$0xff]
    %v26 = vld [vmem:[%s0 + $0x30] sm:$0xff]
    %v27 = vld [vmem:[%s0 + $0x38] sm:$0xff]
    %v28 = vld [vmem:[%s0 + $0x40] sm:$0xff]
    %v29 = vld [vmem:[%s0 + $0x48] sm:$0xff]
    %v30 = vld [vmem:[%s0 + $0x50] sm:$0xff]
    %v31 = vld [vmem:[%s0 + $0x58] sm:$0xff]
    %v32 = vld [vmem:[%s0 + $0x60] sm:$0xff]
    %v33 = vld [vmem:[%s0 + $0x68] sm:$0xff]
    %v34 = vld [vmem:[%s0 + $0x70] sm:$0xff]
    %v35 = vld [vmem:[%s0 + $0x78] sm:$0xff]
    %v36 = vld [vmem:[%s1] sm:$0xff]
    %v37 = vld [vmem:[%s1 + $0x8] sm:$0xff]
    %v38 = vld [vmem:[%s1 + $0x10] sm:$0xff]
    %v39 = vld [vmem:[%s1 + $0x18] sm:$0xff]
    %v40 = vld [vmem:[%s1 + $0x20] sm:$0xff]
    %v41 = vld [vmem:[%s1 + $0x28] sm:$0xff]
    %v42 = vld [vmem:[%s1 + $0x30] sm:$0xff]
    %v43 = vld [vmem:[%s1 + $0x38] sm:$0xff]
    %v44 = vld [vmem:[%s1 + $0x40] sm:$0xff]
    %v45 = vld [vmem:[%s1 + $0x48] sm:$0xff]
    %v46 = vld [vmem:[%s1 + $0x50] sm:$0xff]
    %v47 = vld [vmem:[%s1 + $0x58] sm:$0xff]
    %v48 = vld [vmem:[%s1 + $0x60] sm:$0xff]
    %v49 = vld [vmem:[%s1 + $0x68] sm:$0xff]
    %v50 = vld [vmem:[%s1 + $0x70] sm:$0xff]
    %v51 = vld [vmem:[%s1 + $0x78] sm:$0xff]
    %v52 = vld [vmem:[%s2] sm:$0x1]
    %vm53 = vcmask 523264
    %v55 = vsel %vm53, %v20, 0
    %v58 = vsel %vm53, %v21, 0
    %v61 = vsel %vm53, %v22, 0
    %v64 = vsel %vm53, %v23, 0
    %v67 = vsel %vm53, %v24, 0
    %v70 = vsel %vm53, %v25, 0
    %v73 = vsel %vm53, %v26, 0
    %v76 = vsel %vm53, %v27, 0
    %v79 = vsel %vm53, %v28, 0
    %v82 = vsel %vm53, %v29, 0
    %v85 = vsel %vm53, %v30, 0
    %v88 = vsel %vm53, %v31, 0
    %v91 = vsel %vm53, %v32, 0
    %v94 = vsel %vm53, %v33, 0
    %v97 = vsel %vm53, %v34, 0
    %v100 = vsel %vm53, %v35, 0
    %v103 = vsel %vm53, %v36, 0
    %v106 = vsel %vm53, %v37, 0
    %v109 = vsel %vm53, %v38, 0
    %v112 = vsel %vm53, %v39, 0
    %v115 = vsel %vm53, %v40, 0
    %v118 = vsel %vm53, %v41, 0
    %v121 = vsel %vm53, %v42, 0
    %v124 = vsel %vm53, %v43, 0
    %v127 = vsel %vm53, %v44, 0
    %v130 = vsel %vm53, %v45, 0
    %v133 = vsel %vm53, %v46, 0
    %v136 = vsel %vm53, %v47, 0
    %v139 = vsel %vm53, %v48, 0
    %v142 = vsel %vm53, %v49, 0
    %v145 = vsel %vm53, %v50, 0
    %v148 = vsel %vm53, %v51, 0
    %150 = vmatprep.subr.mxu0 0.0
    %151 = vmatpush1.xpose.msra.mxu0 %v103
    %152 = vmatprep.subr.mxu0 0.0
    %153 = vmatpush1.xpose.msra.mxu0 %v106
    %154 = vmatprep.subr.mxu0 0.0
    %155 = vmatpush1.xpose.msra.mxu0 %v109
    %156 = vmatprep.subr.mxu0 0.0
    %157 = vmatpush1.xpose.msra.mxu0 %v112
    %158 = vmatprep.subr.mxu0 0.0
    %159 = vmatpush1.xpose.msra.mxu0 %v115
    %160 = vmatprep.subr.mxu0 0.0
    %161 = vmatpush1.xpose.msra.mxu0 %v118
    %162 = vmatprep.subr.mxu0 0.0
    %163 = vmatpush1.xpose.msra.mxu0 %v121
    %164 = vmatprep.subr.mxu0 0.0
    %165 = vmatpush1.xpose.msra.mxu0 %v124
    %166 = vmatprep.subr.mxu0 0.0
    %167 = vmatpush1.xpose.msra.mxu0 %v127
    %168 = vmatprep.subr.mxu0 0.0
    %169 = vmatpush1.xpose.msra.mxu0 %v130
    %170 = vmatprep.subr.mxu0 0.0
    %171 = vmatpush1.xpose.msra.mxu0 %v133
    %172 = vmatprep.subr.mxu0 0.0
    %173 = vmatpush1.xpose.msra.mxu0 %v136
    %174 = vmatprep.subr.mxu0 0.0
    %175 = vmatpush1.xpose.msra.mxu0 %v139
    %176 = vmatprep.subr.mxu0 0.0
    %177 = vmatpush1.xpose.msra.mxu0 %v142
    %178 = vmatprep.subr.mxu0 0.0
    %179 = vmatpush1.xpose.msra.mxu0 %v145
    %180 = vmatprep.subr.mxu0 0.0
    %181 = vmatpush1.xpose.msra.mxu0 %v148
    %182 = vmatprep.subr.mxu0 0.0
    %183 = vmatpush1.xpose.msra.mxu0 0.0
    %184 = vmatprep.subr.mxu0 0.0
    %185 = vmatpush1.xpose.msra.mxu0 0.0
    %186 = vmatprep.subr.mxu0 0.0
    %187 = vmatpush1.xpose.msra.mxu0 0.0
    %188 = vmatprep.subr.mxu0 0.0
    %189 = vmatpush1.xpose.msra.mxu0 0.0
    %190 = vmatprep.subr.mxu0 0.0
    %191 = vmatpush1.xpose.msra.mxu0 0.0
    %192 = vmatprep.subr.mxu0 0.0
    %193 = vmatpush1.xpose.msra.mxu0 0.0
    %194 = vmatprep.subr.mxu0 0.0
    %195 = vmatpush1.xpose.msra.mxu0 0.0
    %196 = vmatprep.subr.mxu0 0.0
    %197 = vmatpush1.xpose.msra.mxu0 0.0
    %198 = vmatprep.subr.mxu0 0.0
    %199 = vmatpush1.xpose.msra.mxu0 0.0
    %200 = vmatprep.subr.mxu0 0.0
    %201 = vmatpush1.xpose.msra.mxu0 0.0
    %202 = vmatprep.subr.mxu0 0.0
    %203 = vmatpush1.xpose.msra.mxu0 0.0
    %204 = vmatprep.subr.mxu0 0.0
    %205 = vmatpush1.xpose.msra.mxu0 0.0
    %206 = vmatprep.subr.mxu0 0.0
    %207 = vmatpush1.xpose.msra.mxu0 0.0
    %208 = vmatprep.subr.mxu0 0.0
    %209 = vmatpush1.xpose.msra.mxu0 0.0
    %210 = vmatprep.subr.mxu0 0.0
    %211 = vmatpush1.xpose.msra.mxu0 0.0
    %212 = vmatprep.subr.mxu0 0.0
    %213 = vmatpush1.xpose.msra.mxu0 0.0
    %214 = vmatprep.mubr.f32.mxu0 0.0
    %215 = vmatmul.mubr.f32.gmra.mrb[0].mxu0 %v55
    %v216 = vpop.f32.mrb[0].mxu0
    %v217 = vadd.f32 0.0, %v216
    %v218 = vpop.f32.mrb[0].mxu0
    %219 = vmatprep.mubr.f32.mxu0 0.0
    %220 = vmatmul.mubr.f32.gmra.mrb[0].mxu0 %v58
    %v221 = vpop.f32.mrb[0].mxu0
    %v222 = vadd.f32 0.0, %v221
    %v223 = vpop.f32.mrb[0].mxu0
    %224 = vmatprep.mubr.f32.mxu0 0.0
    %225 = vmatmul.mubr.f32.gmra.mrb[0].mxu0 %v61
    %v226 = vpop.f32.mrb[0].mxu0
    %v227 = vadd.f32 0.0, %v226
    %v228 = vpop.f32.mrb[0].mxu0
    %229 = vmatprep.mubr.f32.mxu0 0.0
    %230 = vmatmul.mubr.f32.gmra.mrb[0].mxu0 %v64
    %v231 = vpop.f32.mrb[0].mxu0
    %v232 = vadd.f32 0.0, %v231
    %v233 = vpop.f32.mrb[0].mxu0
    %234 = vmatprep.mubr.f32.mxu0 0.0
    %235 = vmatmul.mubr.f32.gmra.mrb[0].mxu0 %v67
    %v236 = vpop.f32.mrb[0].mxu0
    %v237 = vadd.f32 0.0, %v236
    %v238 = vpop.f32.mrb[0].mxu0
    %239 = vmatprep.mubr.f32.mxu0 0.0
    %240 = vmatmul.mubr.f32.gmra.mrb[0].mxu0 %v70
    %v241 = vpop.f32.mrb[0].mxu0
    %v242 = vadd.f32 0.0, %v241
    %v243 = vpop.f32.mrb[0].mxu0
    %244 = vmatprep.mubr.f32.mxu0 0.0
    %245 = vmatmul.mubr.f32.gmra.mrb[0].mxu0 %v73
    %v246 = vpop.f32.mrb[0].mxu0
    %v247 = vadd.f32 0.0, %v246
    %v248 = vpop.f32.mrb[0].mxu0
    %249 = vmatprep.mubr.f32.mxu0 0.0
    %250 = vmatmul.mubr.f32.gmra.mrb[0].mxu0 %v76
    %v251 = vpop.f32.mrb[0].mxu0
    %v252 = vadd.f32 0.0, %v251
    %v253 = vpop.f32.mrb[0].mxu0
    %254 = vmatprep.mubr.f32.mxu0 0.0
    %255 = vmatmul.mubr.f32.gmra.mrb[0].mxu0 %v79
    %v256 = vpop.f32.mrb[0].mxu0
    %v257 = vadd.f32 0.0, %v256
    %v258 = vpop.f32.mrb[0].mxu0
    %259 = vmatprep.mubr.f32.mxu0 0.0
    %260 = vmatmul.mubr.f32.gmra.mrb[0].mxu0 %v82
    %v261 = vpop.f32.mrb[0].mxu0
    %v262 = vadd.f32 0.0, %v261
    %v263 = vpop.f32.mrb[0].mxu0
    %264 = vmatprep.mubr.f32.mxu0 0.0
    %265 = vmatmul.mubr.f32.gmra.mrb[0].mxu0 %v85
    %v266 = vpop.f32.mrb[0].mxu0
    %v267 = vadd.f32 0.0, %v266
    %v268 = vpop.f32.mrb[0].mxu0
    %269 = vmatprep.mubr.f32.mxu0 0.0
    %270 = vmatmul.mubr.f32.gmra.mrb[0].mxu0 %v88
    %v271 = vpop.f32.mrb[0].mxu0
    %v272 = vadd.f32 0.0, %v271
    %v273 = vpop.f32.mrb[0].mxu0
    %274 = vmatprep.mubr.f32.mxu0 0.0
    %275 = vmatmul.mubr.f32.gmra.mrb[0].mxu0 %v91
    %v276 = vpop.f32.mrb[0].mxu0
    %v277 = vadd.f32 0.0, %v276
    %v278 = vpop.f32.mrb[0].mxu0
    %279 = vmatprep.mubr.f32.mxu0 0.0
    %280 = vmatmul.mubr.f32.gmra.mrb[0].mxu0 %v94
    %v281 = vpop.f32.mrb[0].mxu0
    %v282 = vadd.f32 0.0, %v281
    %v283 = vpop.f32.mrb[0].mxu0
    %284 = vmatprep.mubr.f32.mxu0 0.0
    %285 = vmatmul.mubr.f32.gmra.mrb[0].mxu0 %v97
    %v286 = vpop.f32.mrb[0].mxu0
    %v287 = vadd.f32 0.0, %v286
    %v288 = vpop.f32.mrb[0].mxu0
    %289 = vmatprep.mubr.f32.mxu0 0.0
    %290 = vmatmul.mubr.f32.gmra.mrb[0].mxu0 %v100
    %v291 = vpop.f32.mrb[0].mxu0
    %v292 = vadd.f32 0.0, %v291
    %v293 = vpop.f32.mrb[0].mxu0
    %294 = vdwg.mxu0
    %v295 = vmul.f32 %v217, 2.0
    %v296 = vmul.f32 %v222, 2.0
    %v297 = vmul.f32 %v227, 2.0
    %v298 = vmul.f32 %v232, 2.0
    %v299 = vmul.f32 %v237, 2.0
    %v300 = vmul.f32 %v242, 2.0
    %v301 = vmul.f32 %v247, 2.0
    %v302 = vmul.f32 %v252, 2.0
    %v303 = vmul.f32 %v257, 2.0
    %v304 = vmul.f32 %v262, 2.0
    %v305 = vmul.f32 %v267, 2.0
    %v306 = vmul.f32 %v272, 2.0
    %v307 = vmul.f32 %v277, 2.0
    %v308 = vmul.f32 %v282, 2.0
    %v309 = vmul.f32 %v287, 2.0
    %v310 = vmul.f32 %v292, 2.0
    %v312 = vlaneseq
    %v313 = vshrl.u32 %v312, 7
    %v314 = vsub.s32 0, %v313
    %v315 = vrot.slane %v52, %v314
    %v317 = vsub.f32 %v315, %v295
    %v318 = vsub.f32 %v315, %v296
    %v319 = vsub.f32 %v315, %v297
    %v320 = vsub.f32 %v315, %v298
    %v321 = vsub.f32 %v315, %v299
    %v322 = vsub.f32 %v315, %v300
    %v323 = vsub.f32 %v315, %v301
    %v324 = vsub.f32 %v315, %v302
    %v325 = vsub.f32 %v315, %v303
    %v326 = vsub.f32 %v315, %v304
    %v327 = vsub.f32 %v315, %v305
    %v328 = vsub.f32 %v315, %v306
    %v329 = vsub.f32 %v315, %v307
    %v330 = vsub.f32 %v315, %v308
    %v331 = vsub.f32 %v315, %v309
    %v332 = vsub.f32 %v315, %v310
    %v333 = vlaneseq
    %v334 = vand.u32 %v333, 127
    %335 = vmin.xlane.f32.xlu0 %v317
    %v336 = vpop.xlane.xlu0 %335
    %337 = vmin.xlane.f32.xlu0 %v318
    %v338 = vpop.xlane.xlu0 %337
    %339 = vmin.xlane.f32.xlu0 %v319
    %v340 = vpop.xlane.xlu0 %339
    %341 = vmin.xlane.f32.xlu0 %v320
    %v342 = vpop.xlane.xlu0 %341
    %343 = vmin.xlane.f32.xlu0 %v321
    %v344 = vpop.xlane.xlu0 %343
    %345 = vmin.xlane.f32.xlu0 %v322
    %v346 = vpop.xlane.xlu0 %345
    %347 = vmin.xlane.f32.xlu0 %v323
    %v348 = vpop.xlane.xlu0 %347
    %349 = vmin.xlane.f32.xlu0 %v324
    %v350 = vpop.xlane.xlu0 %349
    %351 = vmin.xlane.f32.xlu0 %v325
    %v352 = vpop.xlane.xlu0 %351
    %353 = vmin.xlane.f32.xlu0 %v326
    %v354 = vpop.xlane.xlu0 %353
    %355 = vmin.xlane.f32.xlu0 %v327
    %v356 = vpop.xlane.xlu0 %355
    %357 = vmin.xlane.f32.xlu0 %v328
    %v358 = vpop.xlane.xlu0 %357
    %359 = vmin.xlane.f32.xlu0 %v329
    %v360 = vpop.xlane.xlu0 %359
    %361 = vmin.xlane.f32.xlu0 %v330
    %v362 = vpop.xlane.xlu0 %361
    %363 = vmin.xlane.f32.xlu0 %v331
    %v364 = vpop.xlane.xlu0 %363
    %365 = vmin.xlane.f32.xlu0 %v332
    %v366 = vpop.xlane.xlu0 %365
    %vm367 = vcmp.eq.f32.partialorder %v317, %v336
    %vm368 = vcmp.eq.f32.partialorder %v318, %v338
    %vm369 = vcmp.eq.f32.partialorder %v319, %v340
    %vm370 = vcmp.eq.f32.partialorder %v320, %v342
    %vm371 = vcmp.eq.f32.partialorder %v321, %v344
    %vm372 = vcmp.eq.f32.partialorder %v322, %v346
    %vm373 = vcmp.eq.f32.partialorder %v323, %v348
    %vm374 = vcmp.eq.f32.partialorder %v324, %v350
    %vm375 = vcmp.eq.f32.partialorder %v325, %v352
    %vm376 = vcmp.eq.f32.partialorder %v326, %v354
    %vm377 = vcmp.eq.f32.partialorder %v327, %v356
    %vm378 = vcmp.eq.f32.partialorder %v328, %v358
    %vm379 = vcmp.eq.f32.partialorder %v329, %v360
    %vm380 = vcmp.eq.f32.partialorder %v330, %v362
    %vm381 = vcmp.eq.f32.partialorder %v331, %v364
    %vm382 = vcmp.eq.f32.partialorder %v332, %v366
    %v383 = vsel %vm367, %v334, 128
    %v384 = vsel %vm368, %v334, 128
    %v385 = vsel %vm369, %v334, 128
    %v386 = vsel %vm370, %v334, 128
    %v387 = vsel %vm371, %v334, 128
    %v388 = vsel %vm372, %v334, 128
    %v389 = vsel %vm373, %v334, 128
    %v390 = vsel %vm374, %v334, 128
    %v391 = vsel %vm375, %v334, 128
    %v392 = vsel %vm376, %v334, 128
    %v393 = vsel %vm377, %v334, 128
    %v394 = vsel %vm378, %v334, 128
    %v395 = vsel %vm379, %v334, 128
    %v396 = vsel %vm380, %v334, 128
    %v397 = vsel %vm381, %v334, 128
    %v398 = vsel %vm382, %v334, 128
    %v399 = vand.u32 %v383, 65535
    %v400 = vshra.s32 %v383, 16
    %v401 = vcvt.s32.f32 %v399
    %v402 = vcvt.s32.f32 %v400
    %403 = vmin.xlane.f32.xlu0 %v402
    %v404 = vpop.xlane.xlu0 %403
    %vm405 = vcmp.eq.f32.partialorder %v402, %v404
    %v406 = vsel %vm405, %v401, inf
    %407 = vmin.xlane.f32.xlu0 %v406
    %v408 = vpop.xlane.xlu0 %407
    %v409 = vcvt.f32.s32 %v408
    %v410 = vcvt.f32.s32 %v404
    %v411 = vshll.u32 %v410, 16
    %v412 = vadd.s32 %v411, %v409
    %v413 = vand.u32 %v384, 65535
    %v414 = vshra.s32 %v384, 16
    %v415 = vcvt.s32.f32 %v413
    %v416 = vcvt.s32.f32 %v414
    %417 = vmin.xlane.f32.xlu0 %v416
    %v418 = vpop.xlane.xlu0 %417
    %vm419 = vcmp.eq.f32.partialorder %v416, %v418
    %v420 = vsel %vm419, %v415, inf
    %421 = vmin.xlane.f32.xlu0 %v420
    %v422 = vpop.xlane.xlu0 %421
    %v423 = vcvt.f32.s32 %v422
    %v424 = vcvt.f32.s32 %v418
    %v425 = vshll.u32 %v424, 16
    %v426 = vadd.s32 %v425, %v423
    %v427 = vand.u32 %v385, 65535
    %v428 = vshra.s32 %v385, 16
    %v429 = vcvt.s32.f32 %v427
    %v430 = vcvt.s32.f32 %v428
    %431 = vmin.xlane.f32.xlu0 %v430
    %v432 = vpop.xlane.xlu0 %431
    %vm433 = vcmp.eq.f32.partialorder %v430, %v432
    %v434 = vsel %vm433, %v429, inf
    %435 = vmin.xlane.f32.xlu0 %v434
    %v436 = vpop.xlane.xlu0 %435
    %v437 = vcvt.f32.s32 %v436
    %v438 = vcvt.f32.s32 %v432
    %v439 = vshll.u32 %v438, 16
    %v440 = vadd.s32 %v439, %v437
    %v441 = vand.u32 %v386, 65535
    %v442 = vshra.s32 %v386, 16
    %v443 = vcvt.s32.f32 %v441
    %v444 = vcvt.s32.f32 %v442
    %445 = vmin.xlane.f32.xlu0 %v444
    %v446 = vpop.xlane.xlu0 %445
    %vm447 = vcmp.eq.f32.partialorder %v444, %v446
    %v448 = vsel %vm447, %v443, inf
    %449 = vmin.xlane.f32.xlu0 %v448
    %v450 = vpop.xlane.xlu0 %449
    %v451 = vcvt.f32.s32 %v450
    %v452 = vcvt.f32.s32 %v446
    %v453 = vshll.u32 %v452, 16
    %v454 = vadd.s32 %v453, %v451
    %v455 = vand.u32 %v387, 65535
    %v456 = vshra.s32 %v387, 16
    %v457 = vcvt.s32.f32 %v455
    %v458 = vcvt.s32.f32 %v456
    %459 = vmin.xlane.f32.xlu0 %v458
    %v460 = vpop.xlane.xlu0 %459
    %vm461 = vcmp.eq.f32.partialorder %v458, %v460
    %v462 = vsel %vm461, %v457, inf
    %463 = vmin.xlane.f32.xlu0 %v462
    %v464 = vpop.xlane.xlu0 %463
    %v465 = vcvt.f32.s32 %v464
    %v466 = vcvt.f32.s32 %v460
    %v467 = vshll.u32 %v466, 16
    %v468 = vadd.s32 %v467, %v465
    %v469 = vand.u32 %v388, 65535
    %v470 = vshra.s32 %v388, 16
    %v471 = vcvt.s32.f32 %v469
    %v472 = vcvt.s32.f32 %v470
    %473 = vmin.xlane.f32.xlu0 %v472
    %v474 = vpop.xlane.xlu0 %473
    %vm475 = vcmp.eq.f32.partialorder %v472, %v474
    %v476 = vsel %vm475, %v471, inf
    %477 = vmin.xlane.f32.xlu0 %v476
    %v478 = vpop.xlane.xlu0 %477
    %v479 = vcvt.f32.s32 %v478
    %v480 = vcvt.f32.s32 %v474
    %v481 = vshll.u32 %v480, 16
    %v482 = vadd.s32 %v481, %v479
    %v483 = vand.u32 %v389, 65535
    %v484 = vshra.s32 %v389, 16
    %v485 = vcvt.s32.f32 %v483
    %v486 = vcvt.s32.f32 %v484
    %487 = vmin.xlane.f32.xlu0 %v486
    %v488 = vpop.xlane.xlu0 %487
    %vm489 = vcmp.eq.f32.partialorder %v486, %v488
    %v490 = vsel %vm489, %v485, inf
    %491 = vmin.xlane.f32.xlu0 %v490
    %v492 = vpop.xlane.xlu0 %491
    %v493 = vcvt.f32.s32 %v492
    %v494 = vcvt.f32.s32 %v488
    %v495 = vshll.u32 %v494, 16
    %v496 = vadd.s32 %v495, %v493
    %v497 = vand.u32 %v390, 65535
    %v498 = vshra.s32 %v390, 16
    %v499 = vcvt.s32.f32 %v497
    %v500 = vcvt.s32.f32 %v498
    %501 = vmin.xlane.f32.xlu0 %v500
    %v502 = vpop.xlane.xlu0 %501
    %vm503 = vcmp.eq.f32.partialorder %v500, %v502
    %v504 = vsel %vm503, %v499, inf
    %505 = vmin.xlane.f32.xlu0 %v504
    %v506 = vpop.xlane.xlu0 %505
    %v507 = vcvt.f32.s32 %v506
    %v508 = vcvt.f32.s32 %v502
    %v509 = vshll.u32 %v508, 16
    %v510 = vadd.s32 %v509, %v507
    %v511 = vand.u32 %v391, 65535
    %v512 = vshra.s32 %v391, 16
    %v513 = vcvt.s32.f32 %v511
    %v514 = vcvt.s32.f32 %v512
    %515 = vmin.xlane.f32.xlu0 %v514
    %v516 = vpop.xlane.xlu0 %515
    %vm517 = vcmp.eq.f32.partialorder %v514, %v516
    %v518 = vsel %vm517, %v513, inf
    %519 = vmin.xlane.f32.xlu0 %v518
    %v520 = vpop.xlane.xlu0 %519
    %v521 = vcvt.f32.s32 %v520
    %v522 = vcvt.f32.s32 %v516
    %v523 = vshll.u32 %v522, 16
    %v524 = vadd.s32 %v523, %v521
    %v525 = vand.u32 %v392, 65535
    %v526 = vshra.s32 %v392, 16
    %v527 = vcvt.s32.f32 %v525
    %v528 = vcvt.s32.f32 %v526
    %529 = vmin.xlane.f32.xlu0 %v528
    %v530 = vpop.xlane.xlu0 %529
    %vm531 = vcmp.eq.f32.partialorder %v528, %v530
    %v532 = vsel %vm531, %v527, inf
    %533 = vmin.xlane.f32.xlu0 %v532
    %v534 = vpop.xlane.xlu0 %533
    %v535 = vcvt.f32.s32 %v534
    %v536 = vcvt.f32.s32 %v530
    %v537 = vshll.u32 %v536, 16
    %v538 = vadd.s32 %v537, %v535
    %v539 = vand.u32 %v393, 65535
    %v540 = vshra.s32 %v393, 16
    %v541 = vcvt.s32.f32 %v539
    %v542 = vcvt.s32.f32 %v540
    %543 = vmin.xlane.f32.xlu0 %v542
    %v544 = vpop.xlane.xlu0 %543
    %vm545 = vcmp.eq.f32.partialorder %v542, %v544
    %v546 = vsel %vm545, %v541, inf
    %547 = vmin.xlane.f32.xlu0 %v546
    %v548 = vpop.xlane.xlu0 %547
    %v549 = vcvt.f32.s32 %v548
    %v550 = vcvt.f32.s32 %v544
    %v551 = vshll.u32 %v550, 16
    %v552 = vadd.s32 %v551, %v549
    %v553 = vand.u32 %v394, 65535
    %v554 = vshra.s32 %v394, 16
    %v555 = vcvt.s32.f32 %v553
    %v556 = vcvt.s32.f32 %v554
    %557 = vmin.xlane.f32.xlu0 %v556
    %v558 = vpop.xlane.xlu0 %557
    %vm559 = vcmp.eq.f32.partialorder %v556, %v558
    %v560 = vsel %vm559, %v555, inf
    %561 = vmin.xlane.f32.xlu0 %v560
    %v562 = vpop.xlane.xlu0 %561
    %v563 = vcvt.f32.s32 %v562
    %v564 = vcvt.f32.s32 %v558
    %v565 = vshll.u32 %v564, 16
    %v566 = vadd.s32 %v565, %v563
    %v567 = vand.u32 %v395, 65535
    %v568 = vshra.s32 %v395, 16
    %v569 = vcvt.s32.f32 %v567
    %v570 = vcvt.s32.f32 %v568
    %571 = vmin.xlane.f32.xlu0 %v570
    %v572 = vpop.xlane.xlu0 %571
    %vm573 = vcmp.eq.f32.partialorder %v570, %v572
    %v574 = vsel %vm573, %v569, inf
    %575 = vmin.xlane.f32.xlu0 %v574
    %v576 = vpop.xlane.xlu0 %575
    %v577 = vcvt.f32.s32 %v576
    %v578 = vcvt.f32.s32 %v572
    %v579 = vshll.u32 %v578, 16
    %v580 = vadd.s32 %v579, %v577
    %v581 = vand.u32 %v396, 65535
    %v582 = vshra.s32 %v396, 16
    %v583 = vcvt.s32.f32 %v581
    %v584 = vcvt.s32.f32 %v582
    %585 = vmin.xlane.f32.xlu0 %v584
    %v586 = vpop.xlane.xlu0 %585
    %vm587 = vcmp.eq.f32.partialorder %v584, %v586
    %v588 = vsel %vm587, %v583, inf
    %589 = vmin.xlane.f32.xlu0 %v588
    %v590 = vpop.xlane.xlu0 %589
    %v591 = vcvt.f32.s32 %v590
    %v592 = vcvt.f32.s32 %v586
    %v593 = vshll.u32 %v592, 16
    %v594 = vadd.s32 %v593, %v591
    %v595 = vand.u32 %v397, 65535
    %v596 = vshra.s32 %v397, 16
    %v597 = vcvt.s32.f32 %v595
    %v598 = vcvt.s32.f32 %v596
    %599 = vmin.xlane.f32.xlu0 %v598
    %v600 = vpop.xlane.xlu0 %599
    %vm601 = vcmp.eq.f32.partialorder %v598, %v600
    %v602 = vsel %vm601, %v597, inf
    %603 = vmin.xlane.f32.xlu0 %v602
    %v604 = vpop.xlane.xlu0 %603
    %v605 = vcvt.f32.s32 %v604
    %v606 = vcvt.f32.s32 %v600
    %v607 = vshll.u32 %v606, 16
    %v608 = vadd.s32 %v607, %v605
    %v609 = vand.u32 %v398, 65535
    %v610 = vshra.s32 %v398, 16
    %v611 = vcvt.s32.f32 %v609
    %v612 = vcvt.s32.f32 %v610
    %613 = vmin.xlane.f32.xlu0 %v612
    %v614 = vpop.xlane.xlu0 %613
    %vm615 = vcmp.eq.f32.partialorder %v612, %v614
    %v616 = vsel %vm615, %v611, inf
    %617 = vmin.xlane.f32.xlu0 %v616
    %v618 = vpop.xlane.xlu0 %617
    %v619 = vcvt.f32.s32 %v618
    %v620 = vcvt.f32.s32 %v614
    %v621 = vshll.u32 %v620, 16
    %v622 = vadd.s32 %v621, %v619
    %vm623 = vcmask 7168
    %624 = vst.msk [vmem:[%s4] sm:$0xff] %vm623, %v412
    %625 = vst.msk [vmem:[%s4 + $0x8] sm:$0xff] %vm623, %v426
    %626 = vst.msk [vmem:[%s4 + $0x10] sm:$0xff] %vm623, %v440
    %627 = vst.msk [vmem:[%s4 + $0x18] sm:$0xff] %vm623, %v454
    %628 = vst.msk [vmem:[%s4 + $0x20] sm:$0xff] %vm623, %v468
    %629 = vst.msk [vmem:[%s4 + $0x28] sm:$0xff] %vm623, %v482
    %630 = vst.msk [vmem:[%s4 + $0x30] sm:$0xff] %vm623, %v496
    %631 = vst.msk [vmem:[%s4 + $0x38] sm:$0xff] %vm623, %v510
    %632 = vst.msk [vmem:[%s4 + $0x40] sm:$0xff] %vm623, %v524
    %633 = vst.msk [vmem:[%s4 + $0x48] sm:$0xff] %vm623, %v538
    %634 = vst.msk [vmem:[%s4 + $0x50] sm:$0xff] %vm623, %v552
    %635 = vst.msk [vmem:[%s4 + $0x58] sm:$0xff] %vm623, %v566
    %636 = vst.msk [vmem:[%s4 + $0x60] sm:$0xff] %vm623, %v580
    %637 = vst.msk [vmem:[%s4 + $0x68] sm:$0xff] %vm623, %v594
    %638 = vst.msk [vmem:[%s4 + $0x70] sm:$0xff] %vm623, %v608
    %639 = vst.msk [vmem:[%s4 + $0x78] sm:$0xff] %vm623, %v622
    %vm640 = vcmp.eq.s32.totalorder %v334, %v412
    %vm641 = vcmp.eq.s32.totalorder %v334, %v426
    %vm642 = vcmp.eq.s32.totalorder %v334, %v440
    %vm643 = vcmp.eq.s32.totalorder %v334, %v454
    %vm644 = vcmp.eq.s32.totalorder %v334, %v468
    %vm645 = vcmp.eq.s32.totalorder %v334, %v482
    %vm646 = vcmp.eq.s32.totalorder %v334, %v496
    %vm647 = vcmp.eq.s32.totalorder %v334, %v510
    %vm648 = vcmp.eq.s32.totalorder %v334, %v524
    %vm649 = vcmp.eq.s32.totalorder %v334, %v538
    %vm650 = vcmp.eq.s32.totalorder %v334, %v552
    %vm651 = vcmp.eq.s32.totalorder %v334, %v566
    %vm652 = vcmp.eq.s32.totalorder %v334, %v580
    %vm653 = vcmp.eq.s32.totalorder %v334, %v594
    %vm654 = vcmp.eq.s32.totalorder %v334, %v608
    %vm655 = vcmp.eq.s32.totalorder %v334, %v622
    %v656 = vsel %vm640, 1, 0
    %v657 = vsel %vm641, 1, 0
    %v658 = vsel %vm642, 1, 0
    %v659 = vsel %vm643, 1, 0
    %v660 = vsel %vm644, 1, 0
    %v661 = vsel %vm645, 1, 0
    %v662 = vsel %vm646, 1, 0
    %v663 = vsel %vm647, 1, 0
    %v664 = vsel %vm648, 1, 0
    %v665 = vsel %vm649, 1, 0
    %v666 = vsel %vm650, 1, 0
    %v667 = vsel %vm651, 1, 0
    %v668 = vsel %vm652, 1, 0
    %v669 = vsel %vm653, 1, 0
    %v670 = vsel %vm654, 1, 0
    %v671 = vsel %vm655, 1, 0
    %v672 = vcvt.s32.f32 %v656
    %v673 = vcvt.s32.f32 %v657
    %v674 = vcvt.s32.f32 %v658
    %v675 = vcvt.s32.f32 %v659
    %v676 = vcvt.s32.f32 %v660
    %v677 = vcvt.s32.f32 %v661
    %v678 = vcvt.s32.f32 %v662
    %v679 = vcvt.s32.f32 %v663
    %v680 = vcvt.s32.f32 %v664
    %v681 = vcvt.s32.f32 %v665
    %v682 = vcvt.s32.f32 %v666
    %v683 = vcvt.s32.f32 %v667
    %v684 = vcvt.s32.f32 %v668
    %v685 = vcvt.s32.f32 %v669
    %v686 = vcvt.s32.f32 %v670
    %v687 = vcvt.s32.f32 %v671
    %688 = vmatprep.subr.mxu0 0.0
    %689 = vmatpush1.msra.mxu0 %v36
    %690 = vmatprep.subr.mxu0 0.0
    %691 = vmatpush1.msra.mxu0 %v37
    %692 = vmatprep.subr.mxu0 0.0
    %693 = vmatpush1.msra.mxu0 %v38
    %694 = vmatprep.subr.mxu0 0.0
    %695 = vmatpush1.msra.mxu0 %v39
    %696 = vmatprep.subr.mxu0 0.0
    %697 = vmatpush1.msra.mxu0 %v40
    %698 = vmatprep.subr.mxu0 0.0
    %699 = vmatpush1.msra.mxu0 %v41
    %700 = vmatprep.subr.mxu0 0.0
    %701 = vmatpush1.msra.mxu0 %v42
    %702 = vmatprep.subr.mxu0 0.0
    %703 = vmatpush1.msra.mxu0 %v43
    %704 = vmatprep.subr.mxu0 0.0
    %705 = vmatpush1.msra.mxu0 %v44
    %706 = vmatprep.subr.mxu0 0.0
    %707 = vmatpush1.msra.mxu0 %v45
    %708 = vmatprep.subr.mxu0 0.0
    %709 = vmatpush1.msra.mxu0 %v46
    %710 = vmatprep.subr.mxu0 0.0
    %711 = vmatpush1.msra.mxu0 %v47
    %712 = vmatprep.subr.mxu0 0.0
    %713 = vmatpush1.msra.mxu0 %v48
    %714 = vmatprep.subr.mxu0 0.0
    %715 = vmatpush1.msra.mxu0 %v49
    %716 = vmatprep.subr.mxu0 0.0
    %717 = vmatpush1.msra.mxu0 %v50
    %718 = vmatprep.subr.mxu0 0.0
    %719 = vmatpush1.msra.mxu0 %v51
    %720 = vmatprep.subr.mxu0 0.0
    %721 = vmatpush1.msra.mxu0 0.0
    %722 = vmatprep.subr.mxu0 0.0
    %723 = vmatpush1.msra.mxu0 0.0
    %724 = vmatprep.subr.mxu0 0.0
    %725 = vmatpush1.msra.mxu0 0.0
    %726 = vmatprep.subr.mxu0 0.0
    %727 = vmatpush1.msra.mxu0 0.0
    %728 = vmatprep.subr.mxu0 0.0
    %729 = vmatpush1.msra.mxu0 0.0
    %730 = vmatprep.subr.mxu0 0.0
    %731 = vmatpush1.msra.mxu0 0.0
    %732 = vmatprep.subr.mxu0 0.0
    %733 = vmatpush1.msra.mxu0 0.0
    %734 = vmatprep.subr.mxu0 0.0
    %735 = vmatpush1.msra.mxu0 0.0
    %736 = vmatprep.subr.mxu0 0.0
    %737 = vmatpush1.msra.mxu0 0.0
    %738 = vmatprep.subr.mxu0 0.0
    %739 = vmatpush1.msra.mxu0 0.0
    %740 = vmatprep.subr.mxu0 0.0
    %741 = vmatpush1.msra.mxu0 0.0
    %742 = vmatprep.subr.mxu0 0.0
    %743 = vmatpush1.msra.mxu0 0.0
    %744 = vmatprep.subr.mxu0 0.0
    %745 = vmatpush1.msra.mxu0 0.0
    %746 = vmatprep.subr.mxu0 0.0
    %747 = vmatpush1.msra.mxu0 0.0
    %748 = vmatprep.subr.mxu0 0.0
    %749 = vmatpush1.msra.mxu0 0.0
    %750 = vmatprep.subr.mxu0 0.0
    %751 = vmatpush1.msra.mxu0 0.0
    %752 = vmatprep.mubr.f32.mxu0 0.0
    %753 = vmatmul.mubr.f32.gmra.mrb[0].mxu0 %v672
    %v754 = vpop.f32.mrb[0].mxu0
    %v755 = vadd.f32 0.0, %v754
    %v756 = vpop.f32.mrb[0].mxu0
    %757 = vmatprep.mubr.f32.mxu0 0.0
    %758 = vmatmul.mubr.f32.gmra.mrb[0].mxu0 %v673
    %v759 = vpop.f32.mrb[0].mxu0
    %v760 = vadd.f32 0.0, %v759
    %v761 = vpop.f32.mrb[0].mxu0
    %762 = vmatprep.mubr.f32.mxu0 0.0
    %763 = vmatmul.mubr.f32.gmra.mrb[0].mxu0 %v674
    %v764 = vpop.f32.mrb[0].mxu0
    %v765 = vadd.f32 0.0, %v764
    %v766 = vpop.f32.mrb[0].mxu0
    %767 = vmatprep.mubr.f32.mxu0 0.0
    %768 = vmatmul.mubr.f32.gmra.mrb[0].mxu0 %v675
    %v769 = vpop.f32.mrb[0].mxu0
    %v770 = vadd.f32 0.0, %v769
    %v771 = vpop.f32.mrb[0].mxu0
    %772 = vmatprep.mubr.f32.mxu0 0.0
    %773 = vmatmul.mubr.f32.gmra.mrb[0].mxu0 %v676
    %v774 = vpop.f32.mrb[0].mxu0
    %v775 = vadd.f32 0.0, %v774
    %v776 = vpop.f32.mrb[0].mxu0
    %777 = vmatprep.mubr.f32.mxu0 0.0
    %778 = vmatmul.mubr.f32.gmra.mrb[0].mxu0 %v677
    %v779 = vpop.f32.mrb[0].mxu0
    %v780 = vadd.f32 0.0, %v779
    %v781 = vpop.f32.mrb[0].mxu0
    %782 = vmatprep.mubr.f32.mxu0 0.0
    %783 = vmatmul.mubr.f32.gmra.mrb[0].mxu0 %v678
    %v784 = vpop.f32.mrb[0].mxu0
    %v785 = vadd.f32 0.0, %v784
    %v786 = vpop.f32.mrb[0].mxu0
    %787 = vmatprep.mubr.f32.mxu0 0.0
    %788 = vmatmul.mubr.f32.gmra.mrb[0].mxu0 %v679
    %v789 = vpop.f32.mrb[0].mxu0
    %v790 = vadd.f32 0.0, %v789
    %v791 = vpop.f32.mrb[0].mxu0
    %792 = vmatprep.mubr.f32.mxu0 0.0
    %793 = vmatmul.mubr.f32.gmra.mrb[0].mxu0 %v680
    %v794 = vpop.f32.mrb[0].mxu0
    %v795 = vadd.f32 0.0, %v794
    %v796 = vpop.f32.mrb[0].mxu0
    %797 = vmatprep.mubr.f32.mxu0 0.0
    %798 = vmatmul.mubr.f32.gmra.mrb[0].mxu0 %v681
    %v799 = vpop.f32.mrb[0].mxu0
    %v800 = vadd.f32 0.0, %v799
    %v801 = vpop.f32.mrb[0].mxu0
    %802 = vmatprep.mubr.f32.mxu0 0.0
    %803 = vmatmul.mubr.f32.gmra.mrb[0].mxu0 %v682
    %v804 = vpop.f32.mrb[0].mxu0
    %v805 = vadd.f32 0.0, %v804
    %v806 = vpop.f32.mrb[0].mxu0
    %807 = vmatprep.mubr.f32.mxu0 0.0
    %808 = vmatmul.mubr.f32.gmra.mrb[0].mxu0 %v683
    %v809 = vpop.f32.mrb[0].mxu0
    %v810 = vadd.f32 0.0, %v809
    %v811 = vpop.f32.mrb[0].mxu0
    %812 = vmatprep.mubr.f32.mxu0 0.0
    %813 = vmatmul.mubr.f32.gmra.mrb[0].mxu0 %v684
    %v814 = vpop.f32.mrb[0].mxu0
    %v815 = vadd.f32 0.0, %v814
    %v816 = vpop.f32.mrb[0].mxu0
    %817 = vmatprep.mubr.f32.mxu0 0.0
    %818 = vmatmul.mubr.f32.gmra.mrb[0].mxu0 %v685
    %v819 = vpop.f32.mrb[0].mxu0
    %v820 = vadd.f32 0.0, %v819
    %v821 = vpop.f32.mrb[0].mxu0
    %822 = vmatprep.mubr.f32.mxu0 0.0
    %823 = vmatmul.mubr.f32.gmra.mrb[0].mxu0 %v686
    %v824 = vpop.f32.mrb[0].mxu0
    %v825 = vadd.f32 0.0, %v824
    %v826 = vpop.f32.mrb[0].mxu0
    %827 = vmatprep.mubr.f32.mxu0 0.0
    %828 = vmatmul.mubr.f32.gmra.mrb[0].mxu0 %v687
    %v829 = vpop.f32.mrb[0].mxu0
    %v830 = vadd.f32 0.0, %v829
    %v831 = vpop.f32.mrb[0].mxu0
    %832 = vdwg.mxu0
    %833 = vst.msk [vmem:[%s3] sm:$0xff] %vm53, %v755
    %834 = vst.msk [vmem:[%s3 + $0x8] sm:$0xff] %vm53, %v760
    %835 = vst.msk [vmem:[%s3 + $0x10] sm:$0xff] %vm53, %v765
    %836 = vst.msk [vmem:[%s3 + $0x18] sm:$0xff] %vm53, %v770
    %837 = vst.msk [vmem:[%s3 + $0x20] sm:$0xff] %vm53, %v775
    %838 = vst.msk [vmem:[%s3 + $0x28] sm:$0xff] %vm53, %v780
    %839 = vst.msk [vmem:[%s3 + $0x30] sm:$0xff] %vm53, %v785
    %840 = vst.msk [vmem:[%s3 + $0x38] sm:$0xff] %vm53, %v790
    %841 = vst.msk [vmem:[%s3 + $0x40] sm:$0xff] %vm53, %v795
    %842 = vst.msk [vmem:[%s3 + $0x48] sm:$0xff] %vm53, %v800
    %843 = vst.msk [vmem:[%s3 + $0x50] sm:$0xff] %vm53, %v805
    %844 = vst.msk [vmem:[%s3 + $0x58] sm:$0xff] %vm53, %v810
    %845 = vst.msk [vmem:[%s3 + $0x60] sm:$0xff] %vm53, %v815
    %846 = vst.msk [vmem:[%s3 + $0x68] sm:$0xff] %vm53, %v820
    %847 = vst.msk [vmem:[%s3 + $0x70] sm:$0xff] %vm53, %v825
    %848 = vst.msk [vmem:[%s3 + $0x78] sm:$0xff] %vm53, %v830
    %s849 = smul.u32 0, 128
    %v850 = vlaneseq
    %v851 = vshrl.u32 %v850, 7
    %v852 = vadd.s32 %v851, 8
    %v853 = vadd.s32 %v851, 16
    %v854 = vadd.s32 %v851, 24
    %v855 = vadd.s32 %v851, 32
    %v856 = vadd.s32 %v851, 40
    %v857 = vadd.s32 %v851, 48
    %v858 = vadd.s32 %v851, 56
    %v859 = vadd.s32 %v851, 64
    %v860 = vadd.s32 %v851, 72
    %v861 = vadd.s32 %v851, 80
    %v862 = vadd.s32 %v851, 88
    %v863 = vadd.s32 %v851, 96
    %v864 = vadd.s32 %v851, 104
    %v865 = vadd.s32 %v851, 112
    %v866 = vadd.s32 %v851, 120
    %v867 = vstv %s849
    %v868 = vadd.s32 %v867, %v851
    %v869 = vadd.s32 %v867, %v852
    %v870 = vadd.s32 %v867, %v853
    %v871 = vadd.s32 %v867, %v854
    %v872 = vadd.s32 %v867, %v855
    %v873 = vadd.s32 %v867, %v856
    %v874 = vadd.s32 %v867, %v857
    %v875 = vadd.s32 %v867, %v858
    %v876 = vadd.s32 %v867, %v859
    %v877 = vadd.s32 %v867, %v860
    %v878 = vadd.s32 %v867, %v861
    %v879 = vadd.s32 %v867, %v862
    %v880 = vadd.s32 %v867, %v863
    %v881 = vadd.s32 %v867, %v864
    %v882 = vadd.s32 %v867, %v865
    %v883 = vadd.s32 %v867, %v866
    %vm884 = vcmp.lt.s32.totalorder %v868, 128
    %vm885 = vcmp.lt.s32.totalorder %v869, 128
    %vm886 = vcmp.lt.s32.totalorder %v870, 128
    %vm887 = vcmp.lt.s32.totalorder %v871, 128
    %vm888 = vcmp.lt.s32.totalorder %v872, 128
    %vm889 = vcmp.lt.s32.totalorder %v873, 128
    %vm890 = vcmp.lt.s32.totalorder %v874, 128
    %vm891 = vcmp.lt.s32.totalorder %v875, 128
    %vm892 = vcmp.lt.s32.totalorder %v876, 128
    %vm893 = vcmp.lt.s32.totalorder %v877, 128
    %vm894 = vcmp.lt.s32.totalorder %v878, 128
    %vm895 = vcmp.lt.s32.totalorder %v879, 128
    %vm896 = vcmp.lt.s32.totalorder %v880, 128
    %vm897 = vcmp.lt.s32.totalorder %v881, 128
    %vm898 = vcmp.lt.s32.totalorder %v882, 128
    %vm899 = vcmp.lt.s32.totalorder %v883, 128
    %v900 = vsel %vm884, 1, 0
    %v901 = vsel %vm885, 1, 0
    %v902 = vsel %vm886, 1, 0
    %v903 = vsel %vm887, 1, 0
    %v904 = vsel %vm888, 1, 0
    %v905 = vsel %vm889, 1, 0
    %v906 = vsel %vm890, 1, 0
    %v907 = vsel %vm891, 1, 0
    %v908 = vsel %vm892, 1, 0
    %v909 = vsel %vm893, 1, 0
    %v910 = vsel %vm894, 1, 0
    %v911 = vsel %vm895, 1, 0
    %v912 = vsel %vm896, 1, 0
    %v913 = vsel %vm897, 1, 0
    %v914 = vsel %vm898, 1, 0
    %v915 = vsel %vm899, 1, 0
    %v916 = vcvt.s32.f32 %v900
    %v917 = vcvt.s32.f32 %v901
    %v918 = vcvt.s32.f32 %v902
    %v919 = vcvt.s32.f32 %v903
    %v920 = vcvt.s32.f32 %v904
    %v921 = vcvt.s32.f32 %v905
    %v922 = vcvt.s32.f32 %v906
    %v923 = vcvt.s32.f32 %v907
    %v924 = vcvt.s32.f32 %v908
    %v925 = vcvt.s32.f32 %v909
    %v926 = vcvt.s32.f32 %v910
    %v927 = vcvt.s32.f32 %v911
    %v928 = vcvt.s32.f32 %v912
    %v929 = vcvt.s32.f32 %v913
    %v930 = vcvt.s32.f32 %v914
    %v931 = vcvt.s32.f32 %v915
    %v932 = vsub.f32 %v755, %v20
    %v933 = vsub.f32 %v760, %v21
    %v934 = vsub.f32 %v765, %v22
    %v935 = vsub.f32 %v770, %v23
    %v936 = vsub.f32 %v775, %v24
    %v937 = vsub.f32 %v780, %v25
    %v938 = vsub.f32 %v785, %v26
    %v939 = vsub.f32 %v790, %v27
    %v940 = vsub.f32 %v795, %v28
    %v941 = vsub.f32 %v800, %v29
    %v942 = vsub.f32 %v805, %v30
    %v943 = vsub.f32 %v810, %v31
    %v944 = vsub.f32 %v815, %v32
    %v945 = vsub.f32 %v820, %v33
    %v946 = vsub.f32 %v825, %v34
    %v947 = vsub.f32 %v830, %v35
    %v948 = vmul.f32 %v932, %v932
    %v949 = vmul.f32 %v933, %v933
    %v950 = vmul.f32 %v934, %v934
    %v951 = vmul.f32 %v935, %v935
    %v952 = vmul.f32 %v936, %v936
    %v953 = vmul.f32 %v937, %v937
    %v954 = vmul.f32 %v938, %v938
    %v955 = vmul.f32 %v939, %v939
    %v956 = vmul.f32 %v940, %v940
    %v957 = vmul.f32 %v941, %v941
    %v958 = vmul.f32 %v942, %v942
    %v959 = vmul.f32 %v943, %v943
    %v960 = vmul.f32 %v944, %v944
    %v961 = vmul.f32 %v945, %v945
    %v962 = vmul.f32 %v946, %v946
    %v963 = vmul.f32 %v947, %v947
    %v964 = vmul.f32 %v948, %v916
    %v965 = vmul.f32 %v949, %v917
    %v966 = vmul.f32 %v950, %v918
    %v967 = vmul.f32 %v951, %v919
    %v968 = vmul.f32 %v952, %v920
    %v969 = vmul.f32 %v953, %v921
    %v970 = vmul.f32 %v954, %v922
    %v971 = vmul.f32 %v955, %v923
    %v972 = vmul.f32 %v956, %v924
    %v973 = vmul.f32 %v957, %v925
    %v974 = vmul.f32 %v958, %v926
    %v975 = vmul.f32 %v959, %v927
    %v976 = vmul.f32 %v960, %v928
    %v977 = vmul.f32 %v961, %v929
    %v978 = vmul.f32 %v962, %v930
    %v979 = vmul.f32 %v963, %v931
    %v980 = vsel %vm53, %v964, 0.0
    %v981 = vsel %vm53, %v965, 0.0
    %v982 = vadd.f32 %v980, %v981
    %v983 = vsel %vm53, %v966, 0.0
    %v984 = vadd.f32 %v982, %v983
    %v985 = vsel %vm53, %v967, 0.0
    %v986 = vadd.f32 %v984, %v985
    %v987 = vsel %vm53, %v968, 0.0
    %v988 = vadd.f32 %v986, %v987
    %v989 = vsel %vm53, %v969, 0.0
    %v990 = vadd.f32 %v988, %v989
    %v991 = vsel %vm53, %v970, 0.0
    %v992 = vadd.f32 %v990, %v991
    %v993 = vsel %vm53, %v971, 0.0
    %v994 = vadd.f32 %v992, %v993
    %v995 = vsel %vm53, %v972, 0.0
    %v996 = vadd.f32 %v994, %v995
    %v997 = vsel %vm53, %v973, 0.0
    %v998 = vadd.f32 %v996, %v997
    %v999 = vsel %vm53, %v974, 0.0
    %v1000 = vadd.f32 %v998, %v999
    %v1001 = vsel %vm53, %v975, 0.0
    %v1002 = vadd.f32 %v1000, %v1001
    %v1003 = vsel %vm53, %v976, 0.0
    %v1004 = vadd.f32 %v1002, %v1003
    %v1005 = vsel %vm53, %v977, 0.0
    %v1006 = vadd.f32 %v1004, %v1005
    %v1007 = vsel %vm53, %v978, 0.0
    %v1008 = vadd.f32 %v1006, %v1007
    %v1009 = vsel %vm53, %v979, 0.0
    %v1010 = vadd.f32 %v1008, %v1009
    %1011 = vadd.xlane.f32.xlu0 %v1010
    %v1012 = vpop.xlane.xlu0 %1011
    %v1013 = vrot.slane %v1012, 4
    %v1014 = vadd.f32 %v1012, %v1013
    %v1015 = vrot.slane %v1014, 2
    %v1016 = vadd.f32 %v1014, %v1015
    %v1017 = vrot.slane %v1016, 1
    %v1018 = vadd.f32 %v1016, %v1017
    %s1019 = vtos %v1018
    %v1020 = vstv %s1019
    %vm1021 = vcmask 0
    %1022 = vst.msk [vmem:[#allocation2] sm:$0x1] %vm1021, %v1020
    %v1023 = vmul.f32 %v672, %v916
    %v1024 = vmul.f32 %v673, %v917
    %v1025 = vmul.f32 %v674, %v918
    %v1026 = vmul.f32 %v675, %v919
    %v1027 = vmul.f32 %v676, %v920
    %v1028 = vmul.f32 %v677, %v921
    %v1029 = vmul.f32 %v678, %v922
    %v1030 = vmul.f32 %v679, %v923
    %v1031 = vmul.f32 %v680, %v924
    %v1032 = vmul.f32 %v681, %v925
    %v1033 = vmul.f32 %v682, %v926
    %v1034 = vmul.f32 %v683, %v927
    %v1035 = vmul.f32 %v684, %v928
    %v1036 = vmul.f32 %v685, %v929
    %v1037 = vmul.f32 %v686, %v930
    %v1038 = vmul.f32 %v687, %v931
    %v1039 = vadd.f32 %v1023, %v1024
    %v1040 = vadd.f32 %v1039, %v1025
    %v1041 = vadd.f32 %v1040, %v1026
    %v1042 = vadd.f32 %v1041, %v1027
    %v1043 = vadd.f32 %v1042, %v1028
    %v1044 = vadd.f32 %v1043, %v1029
    %v1045 = vadd.f32 %v1044, %v1030
    %v1046 = vadd.f32 %v1045, %v1031
    %v1047 = vadd.f32 %v1046, %v1032
    %v1048 = vadd.f32 %v1047, %v1033
    %v1049 = vadd.f32 %v1048, %v1034
    %v1050 = vadd.f32 %v1049, %v1035
    %v1051 = vadd.f32 %v1050, %v1036
    %v1052 = vadd.f32 %v1051, %v1037
    %v1053 = vadd.f32 %v1052, %v1038
    %v1054 = vrot.slane %v1053, 4
    %v1055 = vadd.f32 %v1053, %v1054
    %v1056 = vrot.slane %v1055, 2
    %v1057 = vadd.f32 %v1055, %v1056
    %v1058 = vrot.slane %v1057, 1
    %v1059 = vadd.f32 %v1057, %v1058
    %1060 = vst [vmem:[#allocation4] sm:$0x1] %v1059
    // Predicated region
    $region14: #{tpu_custom_call.1} parent=1 // pred_check
      _
    $region15: #{tpu_custom_call.1} parent=1 // pred_check_branch
      %1062 = sbr.rel (0) target = $region17
    $region16: #{tpu_custom_call.1} parent=1 // pred_region
      _
    $region17: #{tpu_custom_call.1} parent=1 // pred_fallthru
      _
    // Predicated region
    $region18: #{tpu_custom_call.1} parent=1 // pred_check
      _
    $region19: #{tpu_custom_call.1} parent=1 // pred_check_branch
      %1064 = sbr.rel (0) target = $region21
    $region20: #{tpu_custom_call.1} parent=1 // pred_region
      _
    $region21: #{tpu_custom_call.1} parent=1 // pred_fallthru
      _
    // Predicated region
    $region22: #{tpu_custom_call.1} parent=1 // pred_check
      _
    $region23: #{tpu_custom_call.1} parent=1 // pred_check_branch
      %1066 = sbr.rel (0) target = $region25
    $region24: #{tpu_custom_call.1} parent=1 // pred_region
      %s1068 = ssub.s32 16, 16
      %1069 = vsyncadd [#allocation3], %s1068
      %s1071 = sshll.u32 [#allocation2], 4
      %s1072 = int_to_ptr.vmem [resolvable:$true] %s1071
      %1074 = dma.vmem_to_hbm [thread:$0]  %s1072, 16, %s5, [#allocation3]
    $region25: #{tpu_custom_call.1} parent=1 // pred_fallthru
      _
    // Predicated region
    $region26: #{tpu_custom_call.1} parent=1 // pred_check
      _
    $region27: #{tpu_custom_call.1} parent=1 // pred_check_branch
      %1076 = sbr.rel (0) target = $region29
    $region28: #{tpu_custom_call.1} parent=1 // pred_region
      %s1078 = ssub.s32 16, 16
      %1079 = vsyncadd [#allocation5], %s1078
      %s1081 = sshll.u32 [#allocation4], 4
      %s1082 = int_to_ptr.vmem [resolvable:$true] %s1081
      %1084 = dma.vmem_to_hbm [thread:$0]  %s1082, 16, %s6, [#allocation5]
    $region29: #{tpu_custom_call.1} parent=1 // pred_fallthru
      _
    // Predicated region
    $region30: #{tpu_custom_call.1} parent=1 // pred_check
      _
    $region31: #{tpu_custom_call.1} parent=1 // pred_check_branch
      %1086 = sbr.rel (0) target = $region33
    $region32: #{tpu_custom_call.1} parent=1 // pred_region
      _
    $region33: #{tpu_custom_call.1} parent=1 // pred_fallthru
      _
    // Predicated region
    $region34: #{tpu_custom_call.1} parent=1 // pred_check
      _
    $region35: #{tpu_custom_call.1} parent=1 // pred_check_branch
      %1088 = sbr.rel (0) target = $region37
    $region36: #{tpu_custom_call.1} parent=1 // pred_region
      _
    $region37: #{tpu_custom_call.1} parent=1 // pred_fallthru
      _
    // Predicated region
    $region38: #{tpu_custom_call.1} parent=1 // pred_check
      _
    $region39: #{tpu_custom_call.1} parent=1 // pred_check_branch
      %1090 = sbr.rel (0) target = $region41
    $region40: #{tpu_custom_call.1} parent=1 // pred_region
      %1091 = dma.done [#allocation3], 16
    $region41: #{tpu_custom_call.1} parent=1 // pred_fallthru
      _
    // Predicated region
    $region42: #{tpu_custom_call.1} parent=1 // pred_check
      _
    $region43: #{tpu_custom_call.1} parent=1 // pred_check_branch
      %1093 = sbr.rel (0) target = $region45
    $region44: #{tpu_custom_call.1} parent=1 // pred_region
      %1094 = dma.done [#allocation5], 16
    $region45: #{tpu_custom_call.1} parent=1 // pred_fallthru
      _
    %1095 = vsyncpa [#allocation3], 1
    %1096 = vsyncpa [#allocation5], 1

</llo_original>
